<compile_context>
chip_gen: v7x
topology: tpu7x:2x2x1
jax: 0.10.0
libtpu: 0.0.40
codegen_flags: <defaults>
</compile_context>

<pallas_src>
import functools

import jax
import jax.numpy as jnp
from jax.experimental import pallas as pl
from jax.experimental.pallas import tpu as pltpu


# ----------------------------------------------------------------------------
# Fused single-pass kernel: one grid step per batch element (fewest HBM bytes).
# ----------------------------------------------------------------------------
def _se_fused_kernel(x_ref, w1_ref, w2_ref, o_ref, *, inv_l):
    x = x_ref[0]                                                       # (C, L), native dtype
    # Squeeze: mean over L, accumulated in f32 (no full f32 copy of x kept).
    y = jnp.sum(x, axis=-1, keepdims=True, dtype=jnp.float32) * inv_l  # (C, 1)
    # Excitation (column-vector form -> no transposes needed on W1/W2).
    h = jnp.maximum(
        jnp.dot(w1_ref[...], y, preferred_element_type=jnp.float32), 0.0)   # (H, 1)
    s = jax.nn.sigmoid(
        jnp.dot(w2_ref[...], h, preferred_element_type=jnp.float32))        # (C, 1)
    # Scale: multiply in the input dtype; only the tiny gate is cast.
    o_ref[0] = x * s.astype(o_ref.dtype)


# ----------------------------------------------------------------------------
# Two-pass (reduce-then-scale) kernels for large L.
# ----------------------------------------------------------------------------
def _se_gate_kernel(x_ref, w1_ref, w2_ref, gate_ref, *, inv_l):
    # x_ref: (1, C, l_block); gate_ref: (1, C, 1) f32 (accumulator, then gate).
    k = pl.program_id(1)

    @pl.when(k == 0)
    def _init():
        gate_ref[...] = jnp.zeros_like(gate_ref)

    gate_ref[0] = gate_ref[0] + jnp.sum(
        x_ref[0], axis=-1, keepdims=True, dtype=jnp.float32)            # (C, 1)

    @pl.when(k == pl.num_programs(1) - 1)
    def _finalize():
        y = gate_ref[0] * inv_l                                         # (C, 1) mean
        h = jnp.maximum(
            jnp.dot(w1_ref[...], y, preferred_element_type=jnp.float32), 0.0)
        gate_ref[0] = jax.nn.sigmoid(
            jnp.dot(w2_ref[...], h, preferred_element_type=jnp.float32))


def _se_scale_kernel(gate_ref, x_ref, o_ref):
    s = gate_ref[0].astype(o_ref.dtype)                                 # (C, 1)
    o_ref[0] = x_ref[0] * s                                             # lane broadcast over L


# ----------------------------------------------------------------------------
# Wrapper
# ----------------------------------------------------------------------------
_VMEM_LIMIT = 32 * 1024 * 1024   # safe on v5e/v6e (128 MiB) and v7x (64 MiB physical)
_X_BLOCK_BUDGET = 2 * 1024 * 1024  # per-step x tile; 4x (double-buffered in+out) << limit


def _pick_l_block(L, C, itemsize):
    """Largest lane-dense tile (multiple of 128) dividing L within the VMEM budget."""
    best = None
    for cand in (128, 256, 512, 1024, 2048):
        if L % cand == 0 and C * cand * itemsize <= _X_BLOCK_BUDGET:
            best = cand
    return best


def se_layer(x, w1, w2, *, mode="auto"):
    """SELayer forward.  x: (B, C, L); w1: (C//r, C); w2: (C, C//r)."""
    B, C, L = x.shape
    hidden = w1.shape[0]
    assert w1.shape == (hidden, C) and w2.shape == (C, hidden)

    inv_l = 1.0 / float(L)
    itemsize = jnp.dtype(x.dtype).itemsize
    slab_bytes = C * L * itemsize                 # per-batch x slab
    l_block = _pick_l_block(L, C, itemsize)

    if mode == "auto":
        # Fused (1 read + 1 write of x) when a per-batch slab fits comfortably in VMEM;
        # otherwise reduce-then-scale over lane-dense L tiles (2 reads + 1 write).
        mode = "fused" if (slab_bytes <= _X_BLOCK_BUDGET or l_block is None) else "two_pass"
        # TODO(synk): if L is huge and not a multiple of 128 we fall back to the fused
        # path; a masked/partial last L tile would be needed to tile that case.

    w_specs = [
        pl.BlockSpec((hidden, C), lambda *idx: (0, 0)),   # W1 (H, C), whole array
        pl.BlockSpec((C, hidden), lambda *idx: (0, 0)),   # W2 (C, H), whole array
    ]

    if mode == "fused":
        return pl.pallas_call(
            functools.partial(_se_fused_kernel, inv_l=inv_l),
            out_shape=jax.ShapeDtypeStruct((B, C, L), x.dtype),
            grid=(B,),
            in_specs=[pl.BlockSpec((1, C, L), lambda b: (b, 0, 0))] + w_specs,
            out_specs=pl.BlockSpec((1, C, L), lambda b: (b, 0, 0)),
            compiler_params=pltpu.CompilerParams(
                dimension_semantics=("parallel",),
                vmem_limit_bytes=_VMEM_LIMIT),
        )(x, w1, w2)

    assert mode == "two_pass" and l_block is not None
    n_l = L // l_block

    # Pass 1: per-(B, C) mean over L + excitation MLP -> gate (B, C, 1) in f32.
    gate = pl.pallas_call(
        functools.partial(_se_gate_kernel, inv_l=inv_l),
        out_shape=jax.ShapeDtypeStruct((B, C, 1), jnp.float32),
        grid=(B, n_l),
        in_specs=[pl.BlockSpec((1, C, l_block), lambda b, l: (b, 0, l))] + w_specs,
        out_specs=pl.BlockSpec((1, C, 1), lambda b, l: (b, 0, 0)),
        compiler_params=pltpu.CompilerParams(
            dimension_semantics=("parallel", "arbitrary"),
            vmem_limit_bytes=_VMEM_LIMIT),
    )(x, w1, w2)

    # Pass 2: re-read x in lane-dense tiles and apply the channel gate.
    return pl.pallas_call(
        _se_scale_kernel,
        out_shape=jax.ShapeDtypeStruct((B, C, L), x.dtype),
        grid=(B, n_l),
        in_specs=[
            pl.BlockSpec((1, C, 1), lambda b, l: (b, 0, 0)),
            pl.BlockSpec((1, C, l_block), lambda b, l: (b, 0, l)),
        ],
        out_specs=pl.BlockSpec((1, C, l_block), lambda b, l: (b, 0, l)),
        compiler_params=pltpu.CompilerParams(
            dimension_semantics=("parallel", "parallel"),
            vmem_limit_bytes=_VMEM_LIMIT),
    )(gate, x)


def se_layer_ref(x, w1, w2):
    # Pure-JAX reference mirroring the PyTorch forward.
    y = jnp.mean(x.astype(jnp.float32), axis=-1)           # (B, C)
    h = jnp.maximum(y @ w1.T, 0.0)                          # (B, C//r)
    s = jax.nn.sigmoid(h @ w2.T)                            # (B, C)
    return (x.astype(jnp.float32) * s[:, :, None]).astype(x.dtype)


if __name__ == "__main__":
    key = jax.random.PRNGKey(0)
    kx, k1, k2, kx2 = jax.random.split(key, 4)

    B, C = 2, 64
    reduction = 16
    hidden = C // reduction  # 4

    # PyTorch Linear weight layouts: (out_features, in_features), no bias.
    w1 = jax.random.normal(k1, (hidden, C), dtype=jnp.float32) * (1.0 / jnp.sqrt(C))
    w2 = jax.random.normal(k2, (C, hidden), dtype=jnp.float32) * (1.0 / jnp.sqrt(hidden))

    # 1) Small L -> fused single-pass path (per-batch slab VMEM-resident).
    L = 16
    x = jax.random.normal(kx, (B, C, L), dtype=jnp.float32)
    out = jax.block_until_ready(se_layer(x, w1, w2))
    ref = jax.block_until_ready(se_layer_ref(x, w1, w2))
    assert out.shape == (B, C, L)
    assert jnp.allclose(out, ref, atol=1e-5, rtol=1e-5)

    # 2) Lane-dense reduce-then-scale path (3 tiles of 128 along L), exercised explicitly.
    L2 = 384
    x2 = jax.random.normal(kx2, (B, C, L2), dtype=jnp.float32)
    out2 = jax.block_until_ready(se_layer(x2, w1, w2, mode="two_pass"))
    ref2 = jax.block_until_ready(se_layer_ref(x2, w1, w2))
    assert out2.shape == (B, C, L2)
    assert jnp.allclose(out2, ref2, atol=1e-5, rtol=1e-5)

    print("KERNEL_OK")
</pallas_src>

<mosaic_0001>
module attributes {stable_mosaic.version = 11 : i64} {
  func.func @_se_fused_kernel(%arg0: i32, %arg1: memref<1x64x16xf32, #tpu.memory_space<vmem>>, %arg2: memref<4x64xf32, #tpu.memory_space<vmem>>, %arg3: memref<64x4xf32, #tpu.memory_space<vmem>>, %arg4: memref<1x64x16xf32, #tpu.memory_space<vmem>>) attributes {dimension_semantics = [#tpu.dimension_semantics<parallel>], iteration_bounds = array<i64: 2>, scalar_prefetch = 0 : i64, scratch_operands = 0 : i64, tpu.core_type = #tpu.core_type<tc>, window_params = [{transform_indices = @transform_0, window_bounds = array<i64: 1, 64, 16>}, {pipeline_mode = #tpu.pipeline_mode<synchronous>, transform_indices = @transform_1, window_bounds = array<i64: 4, 64>}, {pipeline_mode = #tpu.pipeline_mode<synchronous>, transform_indices = @transform_2, window_bounds = array<i64: 64, 4>}, {transform_indices = @transform_3, window_bounds = array<i64: 1, 64, 16>}]} {
    %c0 = arith.constant 0 : index
    %c0_0 = arith.constant 0 : index
    %c0_1 = arith.constant 0 : index
    %0 = vector.load %arg1[%c0, %c0_0, %c0_1] : memref<1x64x16xf32, #tpu.memory_space<vmem>>, vector<1x64x16xf32>
    %1 = vector.shape_cast %0 : vector<1x64x16xf32> to vector<64x16xf32>
    %cst = arith.constant dense<0.000000e+00> : vector<64xf32>
    %2 = vector.multi_reduction <add>, %1, %cst [1] : vector<64x16xf32> to vector<64xf32>
    %3 = vector.shape_cast %2 : vector<64xf32> to vector<64x1xf32>
    %cst_2 = arith.constant 6.250000e-02 : f32
    %4 = vector.broadcast %cst_2 : f32 to vector<64x1xf32>
    %5 = arith.mulf %3, %4 : vector<64x1xf32>
    %c0_3 = arith.constant 0 : index
    %c0_4 = arith.constant 0 : index
    %6 = vector.load %arg2[%c0_3, %c0_4] : memref<4x64xf32, #tpu.memory_space<vmem>>, vector<4x64xf32>
    %cst_5 = arith.constant dense<0.000000e+00> : vector<4x1xf32>
    %7 = tpu.matmul %6, %5, %cst_5 {dimension_numbers = #tpu.dot_dimension_numbers<[1], [0], [0], [1], [0, 0, 1, 1], [], []>} : vector<4x64xf32>, vector<64x1xf32>, vector<4x1xf32> -> vector<4x1xf32>
    %cst_6 = arith.constant 0.000000e+00 : f32
    %8 = vector.broadcast %cst_6 : f32 to vector<4x1xf32>
    %9 = arith.maximumf %7, %8 : vector<4x1xf32>
    %c0_7 = arith.constant 0 : index
    %c0_8 = arith.constant 0 : index
    %10 = vector.load %arg3[%c0_7, %c0_8] : memref<64x4xf32, #tpu.memory_space<vmem>>, vector<64x4xf32>
    %cst_9 = arith.constant dense<0.000000e+00> : vector<64x1xf32>
    %11 = tpu.matmul %10, %9, %cst_9 {dimension_numbers = #tpu.dot_dimension_numbers<[1], [0], [0], [1], [0, 0, 1, 1], [], []>} : vector<64x4xf32>, vector<4x1xf32>, vector<64x1xf32> -> vector<64x1xf32>
    %12 = arith.negf %11 : vector<64x1xf32>
    %13 = math.exp %12 : vector<64x1xf32>
    %cst_10 = arith.constant 1.000000e+00 : f32
    %14 = vector.broadcast %cst_10 : f32 to vector<64x1xf32>
    %15 = arith.addf %14, %13 : vector<64x1xf32>
    %16 = arith.divf %14, %15 : vector<64x1xf32>
    %17 = vector.broadcast %16 : vector<64x1xf32> to vector<64x16xf32>
    %18 = arith.mulf %1, %17 : vector<64x16xf32>
    %c0_11 = arith.constant 0 : index
    %c0_12 = arith.constant 0 : index
    %c0_13 = arith.constant 0 : index
    %19 = vector.load %arg4[%c0_11, %c0_12, %c0_13] : memref<1x64x16xf32, #tpu.memory_space<vmem>>, vector<1x64x16xf32>
    %20 = vector.shape_cast %19 : vector<1x64x16xf32> to vector<64x16xf32>
    %21 = vector.shape_cast %18 : vector<64x16xf32> to vector<1x64x16xf32>
    tpu.vector_store %arg4[%c0_11, %c0_12, %c0_13], %21 {strides = array<i32>} : memref<1x64x16xf32, #tpu.memory_space<vmem>>, vector<1x64x16xf32>,
    return
  }
  func.func @transform_0(%arg0: i32) -> (i32, i32, i32) {
    %c0_i32 = arith.constant 0 : i32
    %c0_i32_0 = arith.constant 0 : i32
    %c0_i32_1 = arith.constant 0 : i32
    return %arg0, %c0_i32, %c0_i32_0 : i32, i32, i32
  }
  func.func @transform_1(%arg0: i32) -> (i32, i32) {
    %c0_i32 = arith.constant 0 : i32
    %c0_i32_0 = arith.constant 0 : i32
    %c0_i32_1 = arith.constant 0 : i32
    return %c0_i32, %c0_i32_0 : i32, i32
  }
  func.func @transform_2(%arg0: i32) -> (i32, i32) {
    %c0_i32 = arith.constant 0 : i32
    %c0_i32_0 = arith.constant 0 : i32
    %c0_i32_1 = arith.constant 0 : i32
    return %c0_i32, %c0_i32_0 : i32, i32
  }
  func.func @transform_3(%arg0: i32) -> (i32, i32, i32) {
    %c0_i32 = arith.constant 0 : i32
    %c0_i32_0 = arith.constant 0 : i32
    %c0_i32_1 = arith.constant 0 : i32
    return %arg0, %c0_i32, %c0_i32_0 : i32, i32, i32
  }
}

</mosaic_0001>

<llo_original>
// kernel: tpu_custom_call.1
$region0: #{tpu_custom_call.1}
  #allocation0 [shape = 'u32[]', space=smem, size = 0x4, offset = 0x4, fixed_abs, tag = 'smem constant byte address 0x4 - core index']
  #allocation1 [shape = 'u32[144,128]{1,0:T(1,128)}', space=vmem, size = 0x12000, scoped, tag = 'internal scratch']
  %s0 = inlined_call_operand.vmem [shape: f32[2,64,16], index: 0, kind: input, shape index: {}]
  %s1 = inlined_call_operand.vmem [shape: f32[4,64], index: 1, kind: input, shape index: {}]
  %s2 = inlined_call_operand.vmem [shape: f32[64,4], index: 2, kind: input, shape index: {}]
  %s3 = inlined_call_operand.vmem [shape: f32[2,64,16], index: 3, kind: output, shape index: {}]
  %s4 = sld [smem:[#allocation0]]
  $region45: #{tpu_custom_call.1} parent=0
    _
  %s6 = ssub.s32 1, %s4
  %s7 = scalar_select 0, %s6, %s4
  loop: start=0, step=1, limit=4
  $region2: #{tpu_custom_call.1} parent=0 // loop_pre_header
    _
  $region3: #{tpu_custom_call.1} parent=0 // loop_header
    %s9 = sphi 0, %s13
    %p10 = scmp.ge.s32.totalorder %s9, 4
    %s19 = sphi 0, %s21
    %s22 = sphi 0, %s19
    %s23 = sphi 0, %s22
    %s39 = sphi 0, %s23
    %s43 = sphi 0, %s43
    %s45 = sphi 0, %s43
    %s46 = sphi 0, %s45
    %s60 = sphi 0, %s46
    %s64 = sphi 0, %s64
    %s66 = sphi 0, %s64
    %s67 = sphi 0, %s66
    %s81 = sphi 0, %s67
    %s87 = sphi 0, %s89
    %s90 = sphi 0, %s87
    %s91 = sphi 0, %s90
    %s107 = sphi 0, %s91
  $region4: #{tpu_custom_call.1} parent=0 // loop_header_branch
    %12 = sbr.rel (%p10) target = $region8
  $region5: #{tpu_custom_call.1} parent=0 // loop_body
    %s14 = ssub.s32 %s9, 1
    %s15 = ssub.s32 %s9, 2
    %s16 = sadd.s32 %s9, 1
    %s17 = ssub.s32 %s9, %s16
    %p18 = scmp.eq.s32.totalorder %s17, 0
    %s20 = sadd.s32 %s19, 1
    %s21 = scalar_select %p18, %s19, %s20
    %p24 = pneg %p18
    %p25 = scmp.eq.s32.totalorder %s9, 1
    %p26 = por %p24, %p25
    %p27 = scmp.ne.s32.totalorder %s19, %s22
    %p28 = scmp.eq.s32.totalorder %s9, 0
    %p29 = por %p27, %p28
    %p30 = scmp.ne.s32.totalorder %s19, %s22
    %p31 = scmp.eq.s32.totalorder %s14, 1
    %p32 = por %p30, %p31
    %p33 = scmp.ne.s32.totalorder %s22, %s23
    %p34 = scmp.eq.s32.totalorder %s14, 0
    %p35 = por %p33, %p34
    %p36 = scmp.ne.s32.totalorder %s22, %s23
    %p37 = scmp.eq.s32.totalorder %s15, 1
    %p38 = por %p36, %p37
    %p40 = scmp.ne.s32.totalorder %s23, %s39
    %p41 = scmp.eq.s32.totalorder %s15, 0
    %p42 = por %p40, %p41
    %s44 = sadd.s32 %s43, 1
    %p47 = scmp.eq.s32.totalorder %s9, 1
    %p48 = scmp.ne.s32.totalorder %s43, %s45
    %p49 = scmp.eq.s32.totalorder %s9, 0
    %p50 = por %p48, %p49
    %p51 = scmp.ne.s32.totalorder %s43, %s45
    %p52 = scmp.eq.s32.totalorder %s14, 1
    %p53 = por %p51, %p52
    %p54 = scmp.ne.s32.totalorder %s45, %s46
    %p55 = scmp.eq.s32.totalorder %s14, 0
    %p56 = por %p54, %p55
    %p57 = scmp.ne.s32.totalorder %s45, %s46
    %p58 = scmp.eq.s32.totalorder %s15, 1
    %p59 = por %p57, %p58
    %p61 = scmp.ne.s32.totalorder %s46, %s60
    %p62 = scmp.eq.s32.totalorder %s15, 0
    %p63 = por %p61, %p62
    %s65 = sadd.s32 %s64, 1
    %p68 = scmp.eq.s32.totalorder %s9, 1
    %p69 = scmp.ne.s32.totalorder %s64, %s66
    %p70 = scmp.eq.s32.totalorder %s9, 0
    %p71 = por %p69, %p70
    %p72 = scmp.ne.s32.totalorder %s64, %s66
    %p73 = scmp.eq.s32.totalorder %s14, 1
    %p74 = por %p72, %p73
    %p75 = scmp.ne.s32.totalorder %s66, %s67
    %p76 = scmp.eq.s32.totalorder %s14, 0
    %p77 = por %p75, %p76
    %p78 = scmp.ne.s32.totalorder %s66, %s67
    %p79 = scmp.eq.s32.totalorder %s15, 1
    %p80 = por %p78, %p79
    %p82 = scmp.ne.s32.totalorder %s67, %s81
    %p83 = scmp.eq.s32.totalorder %s15, 0
    %p84 = por %p82, %p83
    %s85 = ssub.s32 %s9, %s16
    %p86 = scmp.eq.s32.totalorder %s85, 0
    %s88 = sadd.s32 %s87, 1
    %s89 = scalar_select %p86, %s87, %s88
    %p92 = pneg %p86
    %p93 = scmp.eq.s32.totalorder %s9, 1
    %p94 = por %p92, %p93
    %p95 = scmp.ne.s32.totalorder %s87, %s90
    %p96 = scmp.eq.s32.totalorder %s9, 0
    %p97 = por %p95, %p96
    %p98 = scmp.ne.s32.totalorder %s87, %s90
    %p99 = scmp.eq.s32.totalorder %s14, 1
    %p100 = por %p98, %p99
    %p101 = scmp.ne.s32.totalorder %s90, %s91
    %p102 = scmp.eq.s32.totalorder %s14, 0
    %p103 = por %p101, %p102
    %p104 = scmp.ne.s32.totalorder %s90, %s91
    %p105 = scmp.eq.s32.totalorder %s15, 1
    %p106 = por %p104, %p105
    %p108 = scmp.ne.s32.totalorder %s91, %s107
    %p109 = scmp.eq.s32.totalorder %s15, 0
    %p110 = por %p108, %p109
    %p111 = scmp.le.s32.totalorder 1, %s9
    %p112 = scmp.lt.s32.totalorder %s9, 3
    %p113 = pnand %p111, %p112
    %p114 = pneg %p113
    // Predicated region
    $region9: #{tpu_custom_call.1} parent=5 // pred_check
      _
    $region10: #{tpu_custom_call.1} parent=5 // pred_check_branch
      %116 = sbr.rel (%p113) target = $region12
    $region11: #{tpu_custom_call.1} parent=5 // pred_region
      %s117 = ssub.s32 %s9, 1
      // Predicated region
      $region13: #{tpu_custom_call.1} parent=11 // pred_check
        %p118 = pneg %p56
      $region14: #{tpu_custom_call.1} parent=11 // pred_check_branch
        %120 = sbr.rel (%p118) target = $region16
      $region15: #{tpu_custom_call.1} parent=11 // pred_region
        _
      $region16: #{tpu_custom_call.1} parent=11 // pred_fallthru
        _
      // Predicated region
      $region17: #{tpu_custom_call.1} parent=11 // pred_check
        %p121 = pneg %p77
      $region18: #{tpu_custom_call.1} parent=11 // pred_check_branch
        %123 = sbr.rel (%p121) target = $region20
      $region19: #{tpu_custom_call.1} parent=11 // pred_region
        _
      $region20: #{tpu_custom_call.1} parent=11 // pred_fallthru
        _
    $region12: #{tpu_custom_call.1} parent=5 // pred_fallthru
      _
    %p124 = scmp.lt.s32.totalorder %s9, 2
    // Predicated region
    $region21: #{tpu_custom_call.1} parent=5 // pred_check
      %p125 = pneg %p124
    $region22: #{tpu_custom_call.1} parent=5 // pred_check_branch
      %127 = sbr.rel (%p125) target = $region24
    $region23: #{tpu_custom_call.1} parent=5 // pred_region
      // Predicated region
      $region25: #{tpu_custom_call.1} parent=23 // pred_check
        %p128 = pneg %p29
      $region26: #{tpu_custom_call.1} parent=23 // pred_check_branch
        %130 = sbr.rel (%p128) target = $region28
      $region27: #{tpu_custom_call.1} parent=23 // pred_region
        %p131 = scmp.lt.s32.totalorder %s9, 1
        %s132 = scalar_select %p131, %s9, 1
        %s133 = smul.addr %s132, 8
        %s134 = smul.addr %s133, 8
        %s135 = scalar_lea.vmem %s0, %s134
      $region28: #{tpu_custom_call.1} parent=23 // pred_fallthru
        _
    $region24: #{tpu_custom_call.1} parent=5 // pred_fallthru
      _
    %p136 = scmp.le.s32.totalorder 1, %s9
    %p137 = scmp.lt.s32.totalorder %s9, 3
    %p138 = pnand %p136, %p137
    %p139 = pneg %p138
    // Predicated region
    $region29: #{tpu_custom_call.1} parent=5 // pred_check
      _
    $region30: #{tpu_custom_call.1} parent=5 // pred_check_branch
      %141 = sbr.rel (%p138) target = $region32
    $region31: #{tpu_custom_call.1} parent=5 // pred_region
      %s142 = ssub.s32 %s9, 1
      %p143 = scmp.lt.s32.totalorder %s14, 1
      %s144 = scalar_select %p143, %s14, 1
      %s145 = smul.addr %s144, 8
      %s146 = smul.addr %s145, 8
      %s147 = scalar_lea.vmem %s0, %s146
      %p148 = pneg %p35
      %p149 = pneg %p32
      %p150 = pneg %p56
      %p151 = pneg %p53
      %p152 = pneg %p77
      %p153 = pneg %p74
      %p154 = pneg %p103
      %p155 = pneg %p100
      %p156 = scmp.lt.s32.totalorder %s14, 1
      %s157 = scalar_select %p156, %s14, 1
      %s158 = smul.addr %s157, 8
      %s159 = smul.addr %s158, 8
      %s160 = scalar_lea.vmem %s3, %s159
      %p161 = scmp.lt.s32.totalorder %s14, 1
      %s162 = scalar_select %p161, %s14, 1
      %s163 = smul.addr %s162, 8
      %s164 = smul.addr %s163, 8
      %s165 = scalar_lea.vmem %s0, %s164
      %p166 = scmp.lt.s32.totalorder %s14, 1
      %s167 = scalar_select %p166, %s14, 1
      %s168 = smul.addr %s167, 8
      %s169 = smul.addr %s168, 8
      %s170 = scalar_lea.vmem %s3, %s169
      %v171 = vld [vmem:[%s165] sm:$0xff]
      %v172 = vld [vmem:[%s165 + $0x8] sm:$0xff]
      %v173 = vld [vmem:[%s165 + $0x10] sm:$0xff]
      %v174 = vld [vmem:[%s165 + $0x18] sm:$0xff]
      %v175 = vld [vmem:[%s165 + $0x20] sm:$0xff]
      %v176 = vld [vmem:[%s165 + $0x28] sm:$0xff]
      %v177 = vld [vmem:[%s165 + $0x30] sm:$0xff]
      %v178 = vld [vmem:[%s165 + $0x38] sm:$0xff]
      %vm179 = vcmask 130048
      %v180 = vsel %vm179, %v171, 0.0
      %181 = vadd.xlane.f32.xlu0 %v180
      %v182 = vpop.xlane.xlu0 %181
      %v183 = vsel %vm179, %v172, 0.0
      %184 = vadd.xlane.f32.xlu0 %v183
      %v185 = vpop.xlane.xlu0 %184
      %v186 = vsel %vm179, %v173, 0.0
      %187 = vadd.xlane.f32.xlu0 %v186
      %v188 = vpop.xlane.xlu0 %187
      %v189 = vsel %vm179, %v174, 0.0
      %190 = vadd.xlane.f32.xlu0 %v189
      %v191 = vpop.xlane.xlu0 %190
      %v192 = vsel %vm179, %v175, 0.0
      %193 = vadd.xlane.f32.xlu0 %v192
      %v194 = vpop.xlane.xlu0 %193
      %v195 = vsel %vm179, %v176, 0.0
      %196 = vadd.xlane.f32.xlu0 %v195
      %v197 = vpop.xlane.xlu0 %196
      %v198 = vsel %vm179, %v177, 0.0
      %199 = vadd.xlane.f32.xlu0 %v198
      %v200 = vpop.xlane.xlu0 %199
      %v201 = vsel %vm179, %v178, 0.0
      %202 = vadd.xlane.f32.xlu0 %v201
      %v203 = vpop.xlane.xlu0 %202
      %v204 = vmul.f32 %v182, 0.0625
      %v205 = vmul.f32 %v185, 0.0625
      %v206 = vmul.f32 %v188, 0.0625
      %v207 = vmul.f32 %v191, 0.0625
      %v208 = vmul.f32 %v194, 0.0625
      %v209 = vmul.f32 %v197, 0.0625
      %v210 = vmul.f32 %v200, 0.0625
      %v211 = vmul.f32 %v203, 0.0625
      %v212 = vld [vmem:[%s1] sm:$0xf]
      %vm213 = vcmask 523264
      %v215 = vsel %vm213, %v212, 0
      %217 = vmatprep.subr.mxu0 0.0
      %218 = vmatpush1.msra.mxu0 %v204
      %219 = vmatprep.subr.mxu0 0.0
      %220 = vmatpush1.msra.mxu0 %v205
      %221 = vmatprep.subr.mxu0 0.0
      %222 = vmatpush1.msra.mxu0 %v206
      %223 = vmatprep.subr.mxu0 0.0
      %224 = vmatpush1.msra.mxu0 %v207
      %225 = vmatprep.subr.mxu0 0.0
      %226 = vmatpush1.msra.mxu0 %v208
      %227 = vmatprep.subr.mxu0 0.0
      %228 = vmatpush1.msra.mxu0 %v209
      %229 = vmatprep.subr.mxu0 0.0
      %230 = vmatpush1.msra.mxu0 %v210
      %231 = vmatprep.subr.mxu0 0.0
      %232 = vmatpush1.msra.mxu0 %v211
      %233 = vmatprep.subr.mxu0 0.0
      %234 = vmatpush1.msra.mxu0 0.0
      %235 = vmatprep.subr.mxu0 0.0
      %236 = vmatpush1.msra.mxu0 0.0
      %237 = vmatprep.subr.mxu0 0.0
      %238 = vmatpush1.msra.mxu0 0.0
      %239 = vmatprep.subr.mxu0 0.0
      %240 = vmatpush1.msra.mxu0 0.0
      %241 = vmatprep.subr.mxu0 0.0
      %242 = vmatpush1.msra.mxu0 0.0
      %243 = vmatprep.subr.mxu0 0.0
      %244 = vmatpush1.msra.mxu0 0.0
      %245 = vmatprep.subr.mxu0 0.0
      %246 = vmatpush1.msra.mxu0 0.0
      %247 = vmatprep.subr.mxu0 0.0
      %248 = vmatpush1.msra.mxu0 0.0
      %249 = vmatprep.subr.mxu0 0.0
      %250 = vmatpush1.msra.mxu0 0.0
      %251 = vmatprep.subr.mxu0 0.0
      %252 = vmatpush1.msra.mxu0 0.0
      %253 = vmatprep.subr.mxu0 0.0
      %254 = vmatpush1.msra.mxu0 0.0
      %255 = vmatprep.subr.mxu0 0.0
      %256 = vmatpush1.msra.mxu0 0.0
      %257 = vmatprep.subr.mxu0 0.0
      %258 = vmatpush1.msra.mxu0 0.0
      %259 = vmatprep.subr.mxu0 0.0
      %260 = vmatpush1.msra.mxu0 0.0
      %261 = vmatprep.subr.mxu0 0.0
      %262 = vmatpush1.msra.mxu0 0.0
      %263 = vmatprep.subr.mxu0 0.0
      %264 = vmatpush1.msra.mxu0 0.0
      %265 = vmatprep.subr.mxu0 0.0
      %266 = vmatpush1.msra.mxu0 0.0
      %267 = vmatprep.subr.mxu0 0.0
      %268 = vmatpush1.msra.mxu0 0.0
      %269 = vmatprep.subr.mxu0 0.0
      %270 = vmatpush1.msra.mxu0 0.0
      %271 = vmatprep.subr.mxu0 0.0
      %272 = vmatpush1.msra.mxu0 0.0
      %273 = vmatprep.subr.mxu0 0.0
      %274 = vmatpush1.msra.mxu0 0.0
      %275 = vmatprep.subr.mxu0 0.0
      %276 = vmatpush1.msra.mxu0 0.0
      %277 = vmatprep.subr.mxu0 0.0
      %278 = vmatpush1.msra.mxu0 0.0
      %279 = vmatprep.subr.mxu0 0.0
      %280 = vmatpush1.msra.mxu0 0.0
      %281 = vmatprep.mubr.f32.mxu0 0.0
      %282 = vmatmul.mubr.f32.gmra.mrb[0].mxu0 %v215
      %v283 = vpop.f32.mrb[0].mxu0
      %v284 = vadd.f32 0.0, %v283
      %v285 = vpop.f32.mrb[0].mxu0
      %286 = vdwg.mxu0
      %v287 = vmax.f32 %v284, 0.0
      %v288 = vld [vmem:[%s2] sm:$0xff]
      %v289 = vld [vmem:[%s2 + $0x8] sm:$0xff]
      %v290 = vld [vmem:[%s2 + $0x10] sm:$0xff]
      %v291 = vld [vmem:[%s2 + $0x18] sm:$0xff]
      %v292 = vld [vmem:[%s2 + $0x20] sm:$0xff]
      %v293 = vld [vmem:[%s2 + $0x28] sm:$0xff]
      %v294 = vld [vmem:[%s2 + $0x30] sm:$0xff]
      %v295 = vld [vmem:[%s2 + $0x38] sm:$0xff]
      %vm296 = vcmask 31744
      %v298 = vsel %vm296, %v288, 0
      %v301 = vsel %vm296, %v289, 0
      %v304 = vsel %vm296, %v290, 0
      %v307 = vsel %vm296, %v291, 0
      %v310 = vsel %vm296, %v292, 0
      %v313 = vsel %vm296, %v293, 0
      %v316 = vsel %vm296, %v294, 0
      %v319 = vsel %vm296, %v295, 0
      %vm321 = vcmask 1043456
      %v323 = vsel %vm321, %v287, 0
      %325 = vmatprep.subr.mxu0 0.0
      %326 = vmatpush1.msra.mxu0 %v323
      %327 = vmatprep.subr.mxu0 0.0
      %328 = vmatpush1.msra.mxu0 0.0
      %329 = vmatprep.subr.mxu0 0.0
      %330 = vmatpush1.msra.mxu0 0.0
      %331 = vmatprep.subr.mxu0 0.0
      %332 = vmatpush1.msra.mxu0 0.0
      %333 = vmatprep.subr.mxu0 0.0
      %334 = vmatpush1.msra.mxu0 0.0
      %335 = vmatprep.subr.mxu0 0.0
      %336 = vmatpush1.msra.mxu0 0.0
      %337 = vmatprep.subr.mxu0 0.0
      %338 = vmatpush1.msra.mxu0 0.0
      %339 = vmatprep.subr.mxu0 0.0
      %340 = vmatpush1.msra.mxu0 0.0
      %341 = vmatprep.subr.mxu0 0.0
      %342 = vmatpush1.msra.mxu0 0.0
      %343 = vmatprep.subr.mxu0 0.0
      %344 = vmatpush1.msra.mxu0 0.0
      %345 = vmatprep.subr.mxu0 0.0
      %346 = vmatpush1.msra.mxu0 0.0
      %347 = vmatprep.subr.mxu0 0.0
      %348 = vmatpush1.msra.mxu0 0.0
      %349 = vmatprep.subr.mxu0 0.0
      %350 = vmatpush1.msra.mxu0 0.0
      %351 = vmatprep.subr.mxu0 0.0
      %352 = vmatpush1.msra.mxu0 0.0
      %353 = vmatprep.subr.mxu0 0.0
      %354 = vmatpush1.msra.mxu0 0.0
      %355 = vmatprep.subr.mxu0 0.0
      %356 = vmatpush1.msra.mxu0 0.0
      %357 = vmatprep.subr.mxu0 0.0
      %358 = vmatpush1.msra.mxu0 0.0
      %359 = vmatprep.subr.mxu0 0.0
      %360 = vmatpush1.msra.mxu0 0.0
      %361 = vmatprep.subr.mxu0 0.0
      %362 = vmatpush1.msra.mxu0 0.0
      %363 = vmatprep.subr.mxu0 0.0
      %364 = vmatpush1.msra.mxu0 0.0
      %365 = vmatprep.subr.mxu0 0.0
      %366 = vmatpush1.msra.mxu0 0.0
      %367 = vmatprep.subr.mxu0 0.0
      %368 = vmatpush1.msra.mxu0 0.0
      %369 = vmatprep.subr.mxu0 0.0
      %370 = vmatpush1.msra.mxu0 0.0
      %371 = vmatprep.subr.mxu0 0.0
      %372 = vmatpush1.msra.mxu0 0.0
      %373 = vmatprep.subr.mxu0 0.0
      %374 = vmatpush1.msra.mxu0 0.0
      %375 = vmatprep.subr.mxu0 0.0
      %376 = vmatpush1.msra.mxu0 0.0
      %377 = vmatprep.subr.mxu0 0.0
      %378 = vmatpush1.msra.mxu0 0.0
      %379 = vmatprep.subr.mxu0 0.0
      %380 = vmatpush1.msra.mxu0 0.0
      %381 = vmatprep.subr.mxu0 0.0
      %382 = vmatpush1.msra.mxu0 0.0
      %383 = vmatprep.subr.mxu0 0.0
      %384 = vmatpush1.msra.mxu0 0.0
      %385 = vmatprep.subr.mxu0 0.0
      %386 = vmatpush1.msra.mxu0 0.0
      %387 = vmatprep.subr.mxu0 0.0
      %388 = vmatpush1.msra.mxu0 0.0
      %389 = vmatprep.mubr.f32.mxu0 0.0
      %390 = vmatmul.mubr.f32.gmra.mrb[0].mxu0 %v298
      %v391 = vpop.f32.mrb[0].mxu0
      %v392 = vadd.f32 0.0, %v391
      %v393 = vpop.f32.mrb[0].mxu0
      %394 = vmatprep.mubr.f32.mxu0 0.0
      %395 = vmatmul.mubr.f32.gmra.mrb[0].mxu0 %v301
      %v396 = vpop.f32.mrb[0].mxu0
      %v397 = vadd.f32 0.0, %v396
      %v398 = vpop.f32.mrb[0].mxu0
      %399 = vmatprep.mubr.f32.mxu0 0.0
      %400 = vmatmul.mubr.f32.gmra.mrb[0].mxu0 %v304
      %v401 = vpop.f32.mrb[0].mxu0
      %v402 = vadd.f32 0.0, %v401
      %v403 = vpop.f32.mrb[0].mxu0
      %404 = vmatprep.mubr.f32.mxu0 0.0
      %405 = vmatmul.mubr.f32.gmra.mrb[0].mxu0 %v307
      %v406 = vpop.f32.mrb[0].mxu0
      %v407 = vadd.f32 0.0, %v406
      %v408 = vpop.f32.mrb[0].mxu0
      %409 = vmatprep.mubr.f32.mxu0 0.0
      %410 = vmatmul.mubr.f32.gmra.mrb[0].mxu0 %v310
      %v411 = vpop.f32.mrb[0].mxu0
      %v412 = vadd.f32 0.0, %v411
      %v413 = vpop.f32.mrb[0].mxu0
      %414 = vmatprep.mubr.f32.mxu0 0.0
      %415 = vmatmul.mubr.f32.gmra.mrb[0].mxu0 %v313
      %v416 = vpop.f32.mrb[0].mxu0
      %v417 = vadd.f32 0.0, %v416
      %v418 = vpop.f32.mrb[0].mxu0
      %419 = vmatprep.mubr.f32.mxu0 0.0
      %420 = vmatmul.mubr.f32.gmra.mrb[0].mxu0 %v316
      %v421 = vpop.f32.mrb[0].mxu0
      %v422 = vadd.f32 0.0, %v421
      %v423 = vpop.f32.mrb[0].mxu0
      %424 = vmatprep.mubr.f32.mxu0 0.0
      %425 = vmatmul.mubr.f32.gmra.mrb[0].mxu0 %v319
      %v426 = vpop.f32.mrb[0].mxu0
      %v427 = vadd.f32 0.0, %v426
      %v428 = vpop.f32.mrb[0].mxu0
      %429 = vdwg.mxu0
      %v430 = vxor.u32 %v392, 2147483648
      %v431 = vxor.u32 %v397, 2147483648
      %v432 = vxor.u32 %v402, 2147483648
      %v433 = vxor.u32 %v407, 2147483648
      %v434 = vxor.u32 %v412, 2147483648
      %v435 = vxor.u32 %v417, 2147483648
      %v436 = vxor.u32 %v422, 2147483648
      %v437 = vxor.u32 %v427, 2147483648
      %v438 = vmul.f32 %v430, 1.442695
      %v439 = vpow.pop %v438
      %v440 = vmul.f32 %v431, 1.442695
      %v441 = vpow.pop %v440
      %v442 = vmul.f32 %v432, 1.442695
      %v443 = vpow.pop %v442
      %v444 = vmul.f32 %v433, 1.442695
      %v445 = vpow.pop %v444
      %v446 = vmul.f32 %v434, 1.442695
      %v447 = vpow.pop %v446
      %v448 = vmul.f32 %v435, 1.442695
      %v449 = vpow.pop %v448
      %v450 = vmul.f32 %v436, 1.442695
      %v451 = vpow.pop %v450
      %v452 = vmul.f32 %v437, 1.442695
      %v453 = vpow.pop %v452
      %v454 = vadd.f32 %v439, 1.0
      %v455 = vadd.f32 %v441, 1.0
      %v456 = vadd.f32 %v443, 1.0
      %v457 = vadd.f32 %v445, 1.0
      %v458 = vadd.f32 %v447, 1.0
      %v459 = vadd.f32 %v449, 1.0
      %v460 = vadd.f32 %v451, 1.0
      %v461 = vadd.f32 %v453, 1.0
      %v462 = vrcp.pop %v454
      %v463 = vmul.f32 1.0, %v462
      %v464 = vrcp.pop %v455
      %v465 = vmul.f32 1.0, %v464
      %v466 = vrcp.pop %v456
      %v467 = vmul.f32 1.0, %v466
      %v468 = vrcp.pop %v457
      %v469 = vmul.f32 1.0, %v468
      %v470 = vrcp.pop %v458
      %v471 = vmul.f32 1.0, %v470
      %v472 = vrcp.pop %v459
      %v473 = vmul.f32 1.0, %v472
      %v474 = vrcp.pop %v460
      %v475 = vmul.f32 1.0, %v474
      %v476 = vrcp.pop %v461
      %v477 = vmul.f32 1.0, %v476
      %479 = vset.pattern.permute.xlu0 0
      %480 = vperm.xlu0 %479, %v463
      %v481 = vpop.permute.xlu0 %480
      %484 = vset.pattern.permute.xlu0 0
      %485 = vperm.xlu0 %484, %v465
      %v486 = vpop.permute.xlu0 %485
      %489 = vset.pattern.permute.xlu0 0
      %490 = vperm.xlu0 %489, %v467
      %v491 = vpop.permute.xlu0 %490
      %494 = vset.pattern.permute.xlu0 0
      %495 = vperm.xlu0 %494, %v469
      %v496 = vpop.permute.xlu0 %495
      %499 = vset.pattern.permute.xlu0 0
      %500 = vperm.xlu0 %499, %v471
      %v501 = vpop.permute.xlu0 %500
      %504 = vset.pattern.permute.xlu0 0
      %505 = vperm.xlu0 %504, %v473
      %v506 = vpop.permute.xlu0 %505
      %509 = vset.pattern.permute.xlu0 0
      %510 = vperm.xlu0 %509, %v475
      %v511 = vpop.permute.xlu0 %510
      %514 = vset.pattern.permute.xlu0 0
      %515 = vperm.xlu0 %514, %v477
      %v516 = vpop.permute.xlu0 %515
      %v518 = vmul.f32 %v171, %v481
      %v519 = vmul.f32 %v172, %v486
      %v520 = vmul.f32 %v173, %v491
      %v521 = vmul.f32 %v174, %v496
      %v522 = vmul.f32 %v175, %v501
      %v523 = vmul.f32 %v176, %v506
      %v524 = vmul.f32 %v177, %v511
      %v525 = vmul.f32 %v178, %v516
      %526 = vst.msk [vmem:[%s170] sm:$0xff] %vm179, %v518
      %527 = vst.msk [vmem:[%s170 + $0x8] sm:$0xff] %vm179, %v519
      %528 = vst.msk [vmem:[%s170 + $0x10] sm:$0xff] %vm179, %v520
      %529 = vst.msk [vmem:[%s170 + $0x18] sm:$0xff] %vm179, %v521
      %530 = vst.msk [vmem:[%s170 + $0x20] sm:$0xff] %vm179, %v522
      %531 = vst.msk [vmem:[%s170 + $0x28] sm:$0xff] %vm179, %v523
      %532 = vst.msk [vmem:[%s170 + $0x30] sm:$0xff] %vm179, %v524
      %533 = vst.msk [vmem:[%s170 + $0x38] sm:$0xff] %vm179, %v525
      %p534 = scmp.lt.s32.totalorder %s14, 1
      %s535 = scalar_select %p534, %s14, 1
      %s536 = smul.addr %s535, 8
      %s537 = smul.addr %s536, 8
      %s538 = scalar_lea.vmem %s3, %s537
      // Predicated region
      $region33: #{tpu_custom_call.1} parent=31 // pred_check
        %p539 = pneg %p100
      $region34: #{tpu_custom_call.1} parent=31 // pred_check_branch
        %541 = sbr.rel (%p539) target = $region36
      $region35: #{tpu_custom_call.1} parent=31 // pred_region
        _
      $region36: #{tpu_custom_call.1} parent=31 // pred_fallthru
        _
    $region32: #{tpu_custom_call.1} parent=5 // pred_fallthru
      _
    %p542 = scmp.le.s32.totalorder 2, %s9
    // Predicated region
    $region37: #{tpu_custom_call.1} parent=5 // pred_check
      %p543 = pneg %p542
    $region38: #{tpu_custom_call.1} parent=5 // pred_check_branch
      %545 = sbr.rel (%p543) target = $region40
    $region39: #{tpu_custom_call.1} parent=5 // pred_region
      %s546 = ssub.s32 %s9, 2
      // Predicated region
      $region41: #{tpu_custom_call.1} parent=39 // pred_check
        %p547 = pneg %p106
      $region42: #{tpu_custom_call.1} parent=39 // pred_check_branch
        %549 = sbr.rel (%p547) target = $region44
      $region43: #{tpu_custom_call.1} parent=39 // pred_region
        %p550 = scmp.lt.s32.totalorder %s15, 1
        %s551 = scalar_select %p550, %s15, 1
        %s552 = smul.addr %s551, 8
        %s553 = smul.addr %s552, 8
        %s554 = scalar_lea.vmem %s3, %s553
      $region44: #{tpu_custom_call.1} parent=39 // pred_fallthru
        _
    $region40: #{tpu_custom_call.1} parent=5 // pred_fallthru
      _
  $region6: #{tpu_custom_call.1} parent=0 // loop_footer
    %s13 = sadd.s32 1, %s9
  $region7: #{tpu_custom_call.1} parent=0 // loop_footer_branch
    %8 = sbr.rel target = $region3
  $region8: #{tpu_custom_call.1} parent=0 // loop_exit
    _

</llo_original>
